<compile_context>
chip_gen: v6e
topology: v6e:2x2x1
jax: 0.10.0
libtpu: 0.0.40
codegen_flags: <defaults>
</compile_context>

<pallas_src>
import math

import numpy as np
import jax
import jax.numpy as jnp
from jax.experimental import pallas as pl
from jax.experimental.pallas import tpu as pltpu


def _log_kernel(x_ref, o_ref):
    # Whole-tile elementwise natural log: vld -> EUP log -> unmasked vst.
    o_ref[...] = jnp.log(x_ref[...])


def pallas_log(
    x,
    *,
    block_bytes=2 * 1024 * 1024,   # ~2 MiB per block: roofline knee, v5e-safe VMEM
    min_bytes=128 * 1024,          # below this, fused XLA log wins
    target_steps=4,                # keep >= ~4 grid steps for pipelining / megacore
    donate_input=False,            # set True if the caller donates x
):
    """Elementwise natural log. Streams large float arrays through a Pallas kernel."""
    orig_shape = x.shape
    dtype = x.dtype
    n = int(math.prod(orig_shape)) if orig_shape else 1
    itemsize = jnp.dtype(dtype).itemsize

    # Fast path / fallback: tiny inputs, non-float dtypes (jnp.log promotes),
    # or sizes we cannot reshape lane-dense without padding.
    if (not jnp.issubdtype(dtype, jnp.floating)) or n * itemsize < min_bytes or n % 128 != 0:
        return jnp.log(x)

    # Lane width: largest of {512, 256, 128} that divides n exactly -> no padding,
    # every store is an unmasked full-lane vst.
    if n % 512 == 0:
        lanes = 512
    elif n % 256 == 0:
        lanes = 256
    else:
        lanes = 128

    rows = n // lanes
    # dtype-aware sublane quantum: 8 (f32), 16 (bf16/f16), 32 (int8/fp8)
    sublane = max(8, 32 // itemsize)
    if rows < sublane:
        return jnp.log(x)

    # Block rows from a constant byte budget (so bf16/int8 blocks don't shrink),
    # capped so the grid has at least `target_steps` steps when possible.
    max_block_rows = max(sublane, (block_bytes // (lanes * itemsize)) // sublane * sublane)
    target_rows = -(-rows // target_steps)                      # cdiv
    target_rows = -(-target_rows // sublane) * sublane          # round up to sublane
    block_rows = min(max_block_rows, target_rows)
    block_rows = min(block_rows, (rows // sublane) * sublane)   # never exceed the array
    block_rows = max(block_rows, sublane)

    slab = x.reshape(rows, lanes)                               # contiguous -> free
    grid = (pl.cdiv(rows, block_rows),)                         # ragged edge masked by Pallas

    out = pl.pallas_call(
        _log_kernel,
        out_shape=jax.ShapeDtypeStruct((rows, lanes), dtype),
        grid_spec=pltpu.PrefetchScalarGridSpec(
            num_scalar_prefetch=0,
            grid=grid,
            in_specs=[pl.BlockSpec((block_rows, lanes), lambda i: (i, 0))],
            out_specs=pl.BlockSpec((block_rows, lanes), lambda i: (i, 0)),
        ),
        compiler_params=pltpu.CompilerParams(
            dimension_semantics=("parallel",),
        ),
        cost_estimate=pl.CostEstimate(
            flops=0,
            transcendentals=n,
            bytes_accessed=2 * n * itemsize,
        ),
        input_output_aliases=({0: 0} if donate_input else {}),
    )(slab)

    return out.reshape(orig_shape)


if __name__ == "__main__":
    key = jax.random.PRNGKey(0)
    k1, k2 = jax.random.split(key)

    # 1) Small module-consistent shape (2, 4, 16, 16): takes the fused fast path.
    shape_small = (2, 4, 16, 16)
    x_small = jax.random.uniform(k1, shape_small, dtype=jnp.float32, minval=0.5, maxval=4.0)
    out_small = jax.block_until_ready(pallas_log(x_small))
    np.testing.assert_allclose(
        np.asarray(out_small), np.asarray(jnp.log(x_small)), rtol=1e-6, atol=1e-6
    )

    # 2) Slightly larger (still small: 512 KiB f32) shape that exercises the
    #    Pallas streaming kernel path (lanes=512, 4 grid steps).
    shape_large = (2, 4, 128, 128)
    x_large = jax.random.uniform(k2, shape_large, dtype=jnp.float32, minval=0.5, maxval=4.0)
    out_large = jax.block_until_ready(pallas_log(x_large))
    np.testing.assert_allclose(
        np.asarray(out_large), np.asarray(jnp.log(x_large)), rtol=1e-6, atol=1e-6
    )

    print("KERNEL_OK")
</pallas_src>

<mosaic_0001>
module attributes {stable_mosaic.version = 11 : i64} {
  func.func @_log_kernel(%arg0: i32, %arg1: memref<64x512xf32, #tpu.memory_space<vmem>>, %arg2: memref<64x512xf32, #tpu.memory_space<vmem>>) attributes {dimension_semantics = [#tpu.dimension_semantics<parallel>], iteration_bounds = array<i64: 4>, scalar_prefetch = 0 : i64, scratch_operands = 0 : i64, tpu.core_type = #tpu.core_type<tc>, window_params = [{transform_indices = @transform_0, window_bounds = array<i64: 64, 512>}, {transform_indices = @transform_1, window_bounds = array<i64: 64, 512>}]} {
    %c0 = arith.constant 0 : index
    %c0_0 = arith.constant 0 : index
    %0 = vector.load %arg1[%c0, %c0_0] : memref<64x512xf32, #tpu.memory_space<vmem>>, vector<64x512xf32>
    %1 = math.log %0 : vector<64x512xf32>
    %c0_1 = arith.constant 0 : index
    %c0_2 = arith.constant 0 : index
    %2 = vector.load %arg2[%c0_1, %c0_2] : memref<64x512xf32, #tpu.memory_space<vmem>>, vector<64x512xf32>
    tpu.vector_store %arg2[%c0_1, %c0_2], %1 {strides = array<i32>} : memref<64x512xf32, #tpu.memory_space<vmem>>, vector<64x512xf32>,
    return
  }
  func.func @transform_0(%arg0: i32) -> (i32, i32) {
    %c0_i32 = arith.constant 0 : i32
    %c0_i32_0 = arith.constant 0 : i32
    return %arg0, %c0_i32 : i32, i32
  }
  func.func @transform_1(%arg0: i32) -> (i32, i32) {
    %c0_i32 = arith.constant 0 : i32
    %c0_i32_0 = arith.constant 0 : i32
    return %arg0, %c0_i32 : i32, i32
  }
}

</mosaic_0001>

<llo_original>
// kernel: tpu_custom_call.1
$region0: #{tpu_custom_call.1}
  #allocation0 [shape = 'u32[]', space=smem, size = 0x4, offset = 0x4, fixed_abs, tag = 'smem constant byte address 0x4 - core index']
  #allocation1 [shape = 'u32[144,128]{1,0:T(1,128)}', space=vmem, size = 0x12000, scoped, tag = 'internal scratch']
  %s0 = inlined_call_operand.hbm [shape: f32[256,512], index: 0, kind: input, shape index: {}]
  %s1 = inlined_call_operand.hbm [shape: f32[256,512], index: 1, kind: output, shape index: {}]
  %s2 = sld [smem:[#allocation0]]
  $region41: #{tpu_custom_call.1} parent=0
    _
  %s4 = ssub.s32 1, %s2
  %s5 = scalar_select 0, %s4, %s2
  $region1: #{tpu_custom_call.1} parent=0
    #allocation2 [shape = 'u8[262144]{0}', space=vmem, size = 0x40000, scoped, tag = 'input window, operand 0']
    #allocation3 [shape = 's32[2]{0}', space=sflag, size = 0x8, scoped, tag = 'scoped memory for tpu_custom_call.1']
    #allocation4 [shape = 's32[2]{0}', space=sflag, size = 0x8, scoped, tag = 'scoped memory for tpu_custom_call.1']
    #allocation5 [shape = 'u8[262144]{0}', space=vmem, size = 0x40000, scoped, tag = 'output window, operand 0']
    %6 = vsyncpa [#allocation3], 0
    %s7 = scalar_lea.sflag [#allocation3], 1
    %8 = vsyncpa %s7, 0
    %9 = vsyncpa [#allocation4], 0
    %s10 = scalar_lea.sflag [#allocation4], 1
    %11 = vsyncpa %s10, 0
    loop: start=0, step=1, limit=6
    $region2: #{tpu_custom_call.1} parent=1 // loop_pre_header
      _
    $region3: #{tpu_custom_call.1} parent=1 // loop_header
      %s13 = sphi 0, %s17
      %p14 = scmp.ge.s32.totalorder %s13, 6
      %s23 = sphi 0, %s25
      %s26 = sphi 0, %s23
      %s27 = sphi 0, %s26
      %s43 = sphi 0, %s27
      %s49 = sphi 0, %s51
      %s52 = sphi 0, %s49
      %s53 = sphi 0, %s52
      %s69 = sphi 0, %s53
    $region4: #{tpu_custom_call.1} parent=1 // loop_header_branch
      %16 = sbr.rel (%p14) target = $region8
    $region5: #{tpu_custom_call.1} parent=1 // loop_body
      %s18 = ssub.s32 %s13, 1
      %s19 = ssub.s32 %s13, 2
      %s20 = sadd.s32 %s13, 1
      %s21 = ssub.s32 %s13, %s20
      %p22 = scmp.eq.s32.totalorder %s21, 0
      %s24 = sadd.s32 %s23, 1
      %s25 = scalar_select %p22, %s23, %s24
      %p28 = pneg %p22
      %p29 = scmp.eq.s32.totalorder %s13, 3
      %p30 = por %p28, %p29
      %p31 = scmp.ne.s32.totalorder %s23, %s26
      %p32 = scmp.eq.s32.totalorder %s13, 0
      %p33 = por %p31, %p32
      %p34 = scmp.ne.s32.totalorder %s23, %s26
      %p35 = scmp.eq.s32.totalorder %s18, 3
      %p36 = por %p34, %p35
      %p37 = scmp.ne.s32.totalorder %s26, %s27
      %p38 = scmp.eq.s32.totalorder %s18, 0
      %p39 = por %p37, %p38
      %p40 = scmp.ne.s32.totalorder %s26, %s27
      %p41 = scmp.eq.s32.totalorder %s19, 3
      %p42 = por %p40, %p41
      %p44 = scmp.ne.s32.totalorder %s27, %s43
      %p45 = scmp.eq.s32.totalorder %s19, 0
      %p46 = por %p44, %p45
      %s47 = ssub.s32 %s13, %s20
      %p48 = scmp.eq.s32.totalorder %s47, 0
      %s50 = sadd.s32 %s49, 1
      %s51 = scalar_select %p48, %s49, %s50
      %p54 = pneg %p48
      %p55 = scmp.eq.s32.totalorder %s13, 3
      %p56 = por %p54, %p55
      %p57 = scmp.ne.s32.totalorder %s49, %s52
      %p58 = scmp.eq.s32.totalorder %s13, 0
      %p59 = por %p57, %p58
      %p60 = scmp.ne.s32.totalorder %s49, %s52
      %p61 = scmp.eq.s32.totalorder %s18, 3
      %p62 = por %p60, %p61
      %p63 = scmp.ne.s32.totalorder %s52, %s53
      %p64 = scmp.eq.s32.totalorder %s18, 0
      %p65 = por %p63, %p64
      %p66 = scmp.ne.s32.totalorder %s52, %s53
      %p67 = scmp.eq.s32.totalorder %s19, 3
      %p68 = por %p66, %p67
      %p70 = scmp.ne.s32.totalorder %s53, %s69
      %p71 = scmp.eq.s32.totalorder %s19, 0
      %p72 = por %p70, %p71
      %p73 = scmp.le.s32.totalorder 1, %s13
      %p74 = scmp.lt.s32.totalorder %s13, 5
      %p75 = pnand %p73, %p74
      %p76 = pneg %p75
      // Predicated region
      $region9: #{tpu_custom_call.1} parent=5 // pred_check
        _
      $region10: #{tpu_custom_call.1} parent=5 // pred_check_branch
        %78 = sbr.rel (%p75) target = $region12
      $region11: #{tpu_custom_call.1} parent=5 // pred_region
        %s79 = ssub.s32 %s13, 1
      $region12: #{tpu_custom_call.1} parent=5 // pred_fallthru
        _
      %p80 = scmp.lt.s32.totalorder %s13, 4
      // Predicated region
      $region13: #{tpu_custom_call.1} parent=5 // pred_check
        %p81 = pneg %p80
      $region14: #{tpu_custom_call.1} parent=5 // pred_check_branch
        %83 = sbr.rel (%p81) target = $region16
      $region15: #{tpu_custom_call.1} parent=5 // pred_region
        // Predicated region
        $region17: #{tpu_custom_call.1} parent=15 // pred_check
          %p84 = pneg %p33
        $region18: #{tpu_custom_call.1} parent=15 // pred_check_branch
          %86 = sbr.rel (%p84) target = $region20
        $region19: #{tpu_custom_call.1} parent=15 // pred_region
          %s87 = sand.u32 %s23, 1
          %s88 = scalar_lea.sflag [#allocation3], %s87
          %s89 = sand.u32 %s23, 1
          %s90 = smul.addr %s89, 256
          %s91 = scalar_lea.vmem [#allocation2], %s90
          %s92 = smul.u32 8, %s13
          %s94 = ssub.s32 4096, 4096
          %95 = vsyncadd %s88, %s94
          %s96 = smul.addr %s92, 4
          %s97 = smul.addr %s96, 128
          %s98 = scalar_lea.hbm %s0, %s97
          %s99 = sshll.u32 %s91, 4
          %s100 = int_to_ptr.vmem [resolvable:$true] %s99
          %105 = dma.hbm_to_vmem [thread:$0]  %s98, 4096, %s100, %s88, 512, 512, 32
        $region20: #{tpu_custom_call.1} parent=15 // pred_fallthru
          _
      $region16: #{tpu_custom_call.1} parent=5 // pred_fallthru
        _
      %p106 = scmp.le.s32.totalorder 1, %s13
      %p107 = scmp.lt.s32.totalorder %s13, 5
      %p108 = pnand %p106, %p107
      %p109 = pneg %p108
      // Predicated region
      $region21: #{tpu_custom_call.1} parent=5 // pred_check
        _
      $region22: #{tpu_custom_call.1} parent=5 // pred_check_branch
        %111 = sbr.rel (%p108) target = $region24
      $region23: #{tpu_custom_call.1} parent=5 // pred_region
        %s112 = ssub.s32 %s13, 1
        %s113 = sand.u32 %s26, 1
        %s114 = scalar_lea.sflag [#allocation3], %s113
        %s115 = sand.u32 %s26, 1
        %s116 = smul.addr %s115, 256
        %s117 = scalar_lea.vmem [#allocation2], %s116
        // Predicated region
        $region25: #{tpu_custom_call.1} parent=23 // pred_check
          %p118 = pneg %p39
        $region26: #{tpu_custom_call.1} parent=23 // pred_check_branch
          %120 = sbr.rel (%p118) target = $region28
        $region27: #{tpu_custom_call.1} parent=23 // pred_region
          %121 = dma.done %s114, 4096
        $region28: #{tpu_custom_call.1} parent=23 // pred_fallthru
          _
        %s122 = sand.u32 %s26, 1
        %s123 = scalar_lea.sflag [#allocation3], %s122
        %s124 = sand.u32 %s26, 1
        %s125 = smul.addr %s124, 256
        %s126 = scalar_lea.vmem [#allocation2], %s125
        %p127 = pneg %p39
        %p128 = pneg %p36
        %p129 = pneg %p65
        %p130 = pneg %p62
        %s131 = sand.u32 %s52, 1
        %s132 = scalar_lea.sflag [#allocation4], %s131
        %s133 = sand.u32 %s52, 1
        %s134 = smul.addr %s133, 256
        %s135 = scalar_lea.vmem [#allocation5], %s134
        %s136 = smul.u32 8, %s18
        %s137 = smul.u32 8, %s18
        %v138 = vld [vmem:[%s117] sm:$0xff]
        %v139 = vld [vmem:[%s117 + $0x8] sm:$0xff]
        %v140 = vld [vmem:[%s117 + $0x10] sm:$0xff]
        %v141 = vld [vmem:[%s117 + $0x18] sm:$0xff]
        %v142 = vld [vmem:[%s117 + $0x20] sm:$0xff]
        %v143 = vld [vmem:[%s117 + $0x28] sm:$0xff]
        %v144 = vld [vmem:[%s117 + $0x30] sm:$0xff]
        %v145 = vld [vmem:[%s117 + $0x38] sm:$0xff]
        %v146 = vld [vmem:[%s117 + $0x40] sm:$0xff]
        %v147 = vld [vmem:[%s117 + $0x48] sm:$0xff]
        %v148 = vld [vmem:[%s117 + $0x50] sm:$0xff]
        %v149 = vld [vmem:[%s117 + $0x58] sm:$0xff]
        %v150 = vld [vmem:[%s117 + $0x60] sm:$0xff]
        %v151 = vld [vmem:[%s117 + $0x68] sm:$0xff]
        %v152 = vld [vmem:[%s117 + $0x70] sm:$0xff]
        %v153 = vld [vmem:[%s117 + $0x78] sm:$0xff]
        %v154 = vld [vmem:[%s117 + $0x80] sm:$0xff]
        %v155 = vld [vmem:[%s117 + $0x88] sm:$0xff]
        %v156 = vld [vmem:[%s117 + $0x90] sm:$0xff]
        %v157 = vld [vmem:[%s117 + $0x98] sm:$0xff]
        %v158 = vld [vmem:[%s117 + $0xa0] sm:$0xff]
        %v159 = vld [vmem:[%s117 + $0xa8] sm:$0xff]
        %v160 = vld [vmem:[%s117 + $0xb0] sm:$0xff]
        %v161 = vld [vmem:[%s117 + $0xb8] sm:$0xff]
        %v162 = vld [vmem:[%s117 + $0xc0] sm:$0xff]
        %v163 = vld [vmem:[%s117 + $0xc8] sm:$0xff]
        %v164 = vld [vmem:[%s117 + $0xd0] sm:$0xff]
        %v165 = vld [vmem:[%s117 + $0xd8] sm:$0xff]
        %v166 = vld [vmem:[%s117 + $0xe0] sm:$0xff]
        %v167 = vld [vmem:[%s117 + $0xe8] sm:$0xff]
        %v168 = vld [vmem:[%s117 + $0xf0] sm:$0xff]
        %v169 = vld [vmem:[%s117 + $0xf8] sm:$0xff]
        %v170 = vlog2.pop %v138
        %v171 = vmul.f32 %v170, 0.6931472
        %v172 = vlog2.pop %v139
        %v173 = vmul.f32 %v172, 0.6931472
        %v174 = vlog2.pop %v140
        %v175 = vmul.f32 %v174, 0.6931472
        %v176 = vlog2.pop %v141
        %v177 = vmul.f32 %v176, 0.6931472
        %v178 = vlog2.pop %v142
        %v179 = vmul.f32 %v178, 0.6931472
        %v180 = vlog2.pop %v143
        %v181 = vmul.f32 %v180, 0.6931472
        %v182 = vlog2.pop %v144
        %v183 = vmul.f32 %v182, 0.6931472
        %v184 = vlog2.pop %v145
        %v185 = vmul.f32 %v184, 0.6931472
        %v186 = vlog2.pop %v146
        %v187 = vmul.f32 %v186, 0.6931472
        %v188 = vlog2.pop %v147
        %v189 = vmul.f32 %v188, 0.6931472
        %v190 = vlog2.pop %v148
        %v191 = vmul.f32 %v190, 0.6931472
        %v192 = vlog2.pop %v149
        %v193 = vmul.f32 %v192, 0.6931472
        %v194 = vlog2.pop %v150
        %v195 = vmul.f32 %v194, 0.6931472
        %v196 = vlog2.pop %v151
        %v197 = vmul.f32 %v196, 0.6931472
        %v198 = vlog2.pop %v152
        %v199 = vmul.f32 %v198, 0.6931472
        %v200 = vlog2.pop %v153
        %v201 = vmul.f32 %v200, 0.6931472
        %v202 = vlog2.pop %v154
        %v203 = vmul.f32 %v202, 0.6931472
        %v204 = vlog2.pop %v155
        %v205 = vmul.f32 %v204, 0.6931472
        %v206 = vlog2.pop %v156
        %v207 = vmul.f32 %v206, 0.6931472
        %v208 = vlog2.pop %v157
        %v209 = vmul.f32 %v208, 0.6931472
        %v210 = vlog2.pop %v158
        %v211 = vmul.f32 %v210, 0.6931472
        %v212 = vlog2.pop %v159
        %v213 = vmul.f32 %v212, 0.6931472
        %v214 = vlog2.pop %v160
        %v215 = vmul.f32 %v214, 0.6931472
        %v216 = vlog2.pop %v161
        %v217 = vmul.f32 %v216, 0.6931472
        %v218 = vlog2.pop %v162
        %v219 = vmul.f32 %v218, 0.6931472
        %v220 = vlog2.pop %v163
        %v221 = vmul.f32 %v220, 0.6931472
        %v222 = vlog2.pop %v164
        %v223 = vmul.f32 %v222, 0.6931472
        %v224 = vlog2.pop %v165
        %v225 = vmul.f32 %v224, 0.6931472
        %v226 = vlog2.pop %v166
        %v227 = vmul.f32 %v226, 0.6931472
        %v228 = vlog2.pop %v167
        %v229 = vmul.f32 %v228, 0.6931472
        %v230 = vlog2.pop %v168
        %v231 = vmul.f32 %v230, 0.6931472
        %v232 = vlog2.pop %v169
        %v233 = vmul.f32 %v232, 0.6931472
        %234 = vst [vmem:[%s135] sm:$0xff] %v171
        %235 = vst [vmem:[%s135 + $0x8] sm:$0xff] %v173
        %236 = vst [vmem:[%s135 + $0x10] sm:$0xff] %v175
        %237 = vst [vmem:[%s135 + $0x18] sm:$0xff] %v177
        %238 = vst [vmem:[%s135 + $0x20] sm:$0xff] %v179
        %239 = vst [vmem:[%s135 + $0x28] sm:$0xff] %v181
        %240 = vst [vmem:[%s135 + $0x30] sm:$0xff] %v183
        %241 = vst [vmem:[%s135 + $0x38] sm:$0xff] %v185
        %242 = vst [vmem:[%s135 + $0x40] sm:$0xff] %v187
        %243 = vst [vmem:[%s135 + $0x48] sm:$0xff] %v189
        %244 = vst [vmem:[%s135 + $0x50] sm:$0xff] %v191
        %245 = vst [vmem:[%s135 + $0x58] sm:$0xff] %v193
        %246 = vst [vmem:[%s135 + $0x60] sm:$0xff] %v195
        %247 = vst [vmem:[%s135 + $0x68] sm:$0xff] %v197
        %248 = vst [vmem:[%s135 + $0x70] sm:$0xff] %v199
        %249 = vst [vmem:[%s135 + $0x78] sm:$0xff] %v201
        %250 = vst [vmem:[%s135 + $0x80] sm:$0xff] %v203
        %251 = vst [vmem:[%s135 + $0x88] sm:$0xff] %v205
        %252 = vst [vmem:[%s135 + $0x90] sm:$0xff] %v207
        %253 = vst [vmem:[%s135 + $0x98] sm:$0xff] %v209
        %254 = vst [vmem:[%s135 + $0xa0] sm:$0xff] %v211
        %255 = vst [vmem:[%s135 + $0xa8] sm:$0xff] %v213
        %256 = vst [vmem:[%s135 + $0xb0] sm:$0xff] %v215
        %257 = vst [vmem:[%s135 + $0xb8] sm:$0xff] %v217
        %258 = vst [vmem:[%s135 + $0xc0] sm:$0xff] %v219
        %259 = vst [vmem:[%s135 + $0xc8] sm:$0xff] %v221
        %260 = vst [vmem:[%s135 + $0xd0] sm:$0xff] %v223
        %261 = vst [vmem:[%s135 + $0xd8] sm:$0xff] %v225
        %262 = vst [vmem:[%s135 + $0xe0] sm:$0xff] %v227
        %263 = vst [vmem:[%s135 + $0xe8] sm:$0xff] %v229
        %264 = vst [vmem:[%s135 + $0xf0] sm:$0xff] %v231
        %265 = vst [vmem:[%s135 + $0xf8] sm:$0xff] %v233
        %s266 = sand.u32 %s52, 1
        %s267 = scalar_lea.sflag [#allocation4], %s266
        %s268 = sand.u32 %s52, 1
        %s269 = smul.addr %s268, 256
        %s270 = scalar_lea.vmem [#allocation5], %s269
        // Predicated region
        $region29: #{tpu_custom_call.1} parent=23 // pred_check
          %p271 = pneg %p62
        $region30: #{tpu_custom_call.1} parent=23 // pred_check_branch
          %273 = sbr.rel (%p271) target = $region32
        $region31: #{tpu_custom_call.1} parent=23 // pred_region
          %s274 = smul.u32 8, %s18
          %s276 = ssub.s32 4096, 4096
          %277 = vsyncadd %s267, %s276
          %s278 = smul.addr %s274, 4
          %s279 = smul.addr %s278, 128
          %s280 = scalar_lea.hbm %s1, %s279
          %s281 = sshll.u32 %s270, 4
          %s282 = int_to_ptr.vmem [resolvable:$true] %s281
          %287 = dma.vmem_to_hbm [thread:$0]  %s282, 4096, %s280, %s267, 512, 512, 32
        $region32: #{tpu_custom_call.1} parent=23 // pred_fallthru
          _
      $region24: #{tpu_custom_call.1} parent=5 // pred_fallthru
        _
      %p288 = scmp.le.s32.totalorder 2, %s13
      // Predicated region
      $region33: #{tpu_custom_call.1} parent=5 // pred_check
        %p289 = pneg %p288
      $region34: #{tpu_custom_call.1} parent=5 // pred_check_branch
        %291 = sbr.rel (%p289) target = $region36
      $region35: #{tpu_custom_call.1} parent=5 // pred_region
        %s292 = ssub.s32 %s13, 2
        // Predicated region
        $region37: #{tpu_custom_call.1} parent=35 // pred_check
          %p293 = pneg %p68
        $region38: #{tpu_custom_call.1} parent=35 // pred_check_branch
          %295 = sbr.rel (%p293) target = $region40
        $region39: #{tpu_custom_call.1} parent=35 // pred_region
          %s296 = sand.u32 %s53, 1
          %s297 = scalar_lea.sflag [#allocation4], %s296
          %s298 = sand.u32 %s53, 1
          %s299 = smul.addr %s298, 256
          %s300 = scalar_lea.vmem [#allocation5], %s299
          %301 = dma.done %s297, 4096
        $region40: #{tpu_custom_call.1} parent=35 // pred_fallthru
          _
      $region36: #{tpu_custom_call.1} parent=5 // pred_fallthru
        _
    $region6: #{tpu_custom_call.1} parent=1 // loop_footer
      %s17 = sadd.s32 1, %s13
    $region7: #{tpu_custom_call.1} parent=1 // loop_footer_branch
      %12 = sbr.rel target = $region3
    $region8: #{tpu_custom_call.1} parent=1 // loop_exit
      _
    %302 = vsyncpa [#allocation3], 1
    %s303 = scalar_lea.sflag [#allocation3], 1
    %304 = vsyncpa %s303, 1
    %305 = vsyncpa [#allocation4], 1
    %s306 = scalar_lea.sflag [#allocation4], 1
    %307 = vsyncpa %s306, 1

</llo_original>
